<compile_context>
chip_gen: v7x
topology: tpu7x:2x2x1
jax: 0.10.0
libtpu: 0.0.40
codegen_flags: <defaults>
</compile_context>

<pallas_src>
import functools

import jax
import jax.numpy as jnp
from jax import lax
from jax.experimental import pallas as pl
from jax.experimental.pallas import tpu as pltpu


def _dwce_kernel(logits_ref, targets_ref, loss_ref, count_ref, *,
                 num_classes, dynamic):
    step = pl.program_id(1)

    @pl.when(step == 0)
    def _init():
        loss_ref[...] = jnp.zeros_like(loss_ref)
        count_ref[...] = jnp.zeros_like(count_ref)

    raw = logits_ref[...]                                  # (tile_n, C) input dtype
    logits = raw.astype(jnp.float32)
    tgt = targets_ref[...]                                 # (tile_n, 1) int32, pad rows = -1

    # One-hot via broadcast compare against a (1, C) iota.
    # Padded rows (target == -1) produce an all-zero row and thus contribute
    # nothing to either matmul below -> no per-element row mask needed.
    class_ids = lax.broadcasted_iota(jnp.int32, (1, num_classes), 1)
    onehot = (tgt == class_ids).astype(jnp.float32)        # (tile_n, C)

    # Row-wise log-sum-exp; the max is taken in the native dtype (exact, it is
    # one of the elements), only the exp/sum path runs in f32.
    m = jnp.max(raw, axis=1, keepdims=True).astype(jnp.float32)
    lse = m + jnp.log(jnp.sum(jnp.exp(logits - m), axis=1, keepdims=True))

    # Per-row cross-entropy loss (padded rows are killed by their zero one-hot).
    tgt_logit = jnp.sum(onehot * logits, axis=1, keepdims=True)   # (tile_n, 1)
    per_row_loss = lse - tgt_logit                                # (tile_n, 1)

    # Per-class sums on the otherwise idle MXU:
    #   (1, tile_n) @ (tile_n, C)  (lhs stored transposed -> contract dim 0).
    contract_rows = (((0,), (0,)), ((), ()))
    loss_ref[...] += lax.dot_general(
        per_row_loss, onehot, contract_rows,
        precision=lax.Precision.HIGHEST,          # f32 multi-pass matmul
        preferred_element_type=jnp.float32,
    ).reshape(loss_ref.shape)

    if dynamic:
        ones = jnp.ones_like(per_row_loss)
        # counts are exact even at default matmul precision (0/1 inputs).
        count_ref[...] += lax.dot_general(
            ones, onehot, contract_rows,
            preferred_element_type=jnp.float32,
        ).reshape(count_ref.shape)


def _cdiv(a, b):
    return -(-a // b)


def _round_up(x, m):
    return ((x + m - 1) // m) * m


def _vmem_capacity_bytes():
    try:
        cap = int(pltpu.get_tpu_info().vmem_capacity_bytes)
        if cap > 0:
            return cap
    except Exception:
        pass
    return 64 * 1024 * 1024          # conservative fallback (v7x per-TC)


def _choose_tile_n(n, c, itemsize, vmem_budget_bytes):
    lane_bytes = 128 * 4
    # Double-buffered logits block + ~6 live f32 (tile, C) temporaries
    # (cast, onehot, exp, product, ...), plus the lane-padded targets block
    # (double-buffered) and a handful of lane-padded (tile, 1) f32 row temps.
    per_row = (c * (2 * itemsize + 6 * 4)
               + 2 * lane_bytes
               + 4 * lane_bytes)
    tile = max(8, vmem_budget_bytes // per_row)
    tile = min(tile, 16384, _round_up(n, 8))
    return int(max(8, (tile // 8) * 8))


def dynamic_weighted_cross_entropy_loss(logits, targets, num_classes,
                                        dynamic=True, smooth_eps=1e-5,
                                        tile_n=None, num_row_splits=None):
    """logits: (N, C) float (f32 or bf16); targets: (N,) int. Returns scalar f32."""
    n, c = logits.shape
    assert c == num_classes
    targets_2d = targets.astype(jnp.int32).reshape(n, 1)

    itemsize = jnp.dtype(logits.dtype).itemsize
    vmem_cap = _vmem_capacity_bytes()
    if tile_n is None:
        tile_n = _choose_tile_n(n, c, itemsize, int(vmem_cap * 0.30))

    grid_n = _cdiv(n, tile_n)
    if num_row_splits is None:
        # 2-way row split feeds both TensorCores on v7x megacore; on single-TC
        # parts it is just a 2x outer loop with negligible overhead.
        num_row_splits = 2 if grid_n >= 2 else 1
    steps = _cdiv(grid_n, num_row_splits)
    n_pad = num_row_splits * steps * tile_n

    if n_pad != n:
        logits = jnp.pad(logits, ((0, n_pad - n), (0, 0)))
        # Pad targets with an out-of-range class so padded rows contribute
        # nothing (no in-kernel row mask).
        targets_2d = jnp.pad(targets_2d, ((0, n_pad - n), (0, 0)),
                             constant_values=-1)

    kernel = functools.partial(_dwce_kernel,
                               num_classes=int(num_classes),
                               dynamic=bool(dynamic))

    cost = pl.CostEstimate(
        flops=int(12 * n_pad * c),
        transcendentals=int(n_pad * c),
        bytes_accessed=int(n_pad * c * itemsize + n_pad * 4
                           + 2 * num_row_splits * c * 4),
    )

    loss_parts, count_parts = pl.pallas_call(
        kernel,
        out_shape=(jax.ShapeDtypeStruct((num_row_splits, 1, c), jnp.float32),
                   jax.ShapeDtypeStruct((num_row_splits, 1, c), jnp.float32)),
        grid_spec=pltpu.PrefetchScalarGridSpec(
            num_scalar_prefetch=0,
            grid=(num_row_splits, steps),
            in_specs=[
                pl.BlockSpec((tile_n, c), lambda p, i, s=steps: (p * s + i, 0)),
                pl.BlockSpec((tile_n, 1), lambda p, i, s=steps: (p * s + i, 0)),
            ],
            out_specs=(
                pl.BlockSpec((1, 1, c), lambda p, i: (p, 0, 0)),
                pl.BlockSpec((1, 1, c), lambda p, i: (p, 0, 0)),
            ),
        ),
        compiler_params=pltpu.CompilerParams(
            dimension_semantics=("parallel", "arbitrary"),
            vmem_limit_bytes=int(vmem_cap * 0.75),
        ),
        cost_estimate=cost,
    )(logits, targets_2d)

    # Tiny O(num_classes) finalize in the wrapper (lane-dense kernel outputs).
    loss_sums = jnp.sum(loss_parts.reshape(num_row_splits, c), axis=0)
    if dynamic:
        counts = jnp.sum(count_parts.reshape(num_row_splits, c), axis=0)
        inv = 1.0 / (counts + smooth_eps)
        cw = inv / jnp.sum(inv) * num_classes
    else:
        cw = jnp.ones((c,), jnp.float32)        # default_weights buffer (all ones)
    return jnp.sum(cw * loss_sums) / n


def _reference_dynamic(logits, targets, num_classes, smooth_eps=1e-5):
    counts = jnp.bincount(targets, length=num_classes).astype(jnp.float32)
    cw = 1.0 / (counts + smooth_eps)
    cw = cw / jnp.sum(cw) * num_classes
    sw = cw[targets]
    logz = jax.scipy.special.logsumexp(logits.astype(jnp.float32), axis=1)
    loss = logz - logits[jnp.arange(logits.shape[0]), targets].astype(jnp.float32)
    return jnp.mean(loss * sw)


def _reference_static(logits, targets):
    logz = jax.scipy.special.logsumexp(logits.astype(jnp.float32), axis=1)
    loss = logz - logits[jnp.arange(logits.shape[0]), targets].astype(jnp.float32)
    return jnp.mean(loss)


if __name__ == "__main__":
    key = jax.random.PRNGKey(0)
    k1, k2, k3 = jax.random.split(key, 3)

    # Test 1: dynamic weights, single tile (batch=8, classes=4).
    num_classes = 4
    batch = 8
    logits = jax.random.normal(k1, (batch, num_classes), dtype=jnp.float32)
    targets = jax.random.randint(k2, (batch,), 0, num_classes, dtype=jnp.int32)

    out = dynamic_weighted_cross_entropy_loss(logits, targets, num_classes)
    out = jax.block_until_ready(out)
    ref = _reference_dynamic(logits, targets, num_classes)
    assert jnp.allclose(out, ref, rtol=1e-5, atol=1e-5), (out, ref)

    # Test 2: static (dynamic=False) path == plain mean cross-entropy.
    out_s = dynamic_weighted_cross_entropy_loss(logits, targets, num_classes,
                                                dynamic=False)
    out_s = jax.block_until_ready(out_s)
    ref_s = _reference_static(logits, targets)
    assert jnp.allclose(out_s, ref_s, rtol=1e-5, atol=1e-5), (out_s, ref_s)

    # Test 3: multi-tile grid with padded (target = -1) rows and the 2-way
    # row split (batch=22, tile_n=8 -> grid (2, 2), 10 padded rows).
    batch2 = 22
    logits2 = jax.random.normal(k3, (batch2, num_classes), dtype=jnp.float32)
    targets2 = (jnp.arange(batch2, dtype=jnp.int32) % num_classes)
    out2 = dynamic_weighted_cross_entropy_loss(logits2, targets2, num_classes,
                                               tile_n=8)
    out2 = jax.block_until_ready(out2)
    ref2 = _reference_dynamic(logits2, targets2, num_classes)
    assert jnp.allclose(out2, ref2, rtol=1e-5, atol=1e-5), (out2, ref2)

    print("KERNEL_OK")
</pallas_src>

<mosaic_0001>
module attributes {stable_mosaic.version = 11 : i64} {
  func.func @_dwce_kernel(%arg0: i32, %arg1: i32, %arg2: memref<8x4xf32, #tpu.memory_space<vmem>>, %arg3: memref<8x1xi32, #tpu.memory_space<vmem>>, %arg4: memref<1x1x4xf32, #tpu.memory_space<vmem>>, %arg5: memref<1x1x4xf32, #tpu.memory_space<vmem>>) attributes {dimension_semantics = [#tpu.dimension_semantics<parallel>, #tpu.dimension_semantics<arbitrary>], iteration_bounds = array<i64: 1, 1>, scalar_prefetch = 0 : i64, scratch_operands = 0 : i64, tpu.core_type = #tpu.core_type<tc>, window_params = [{transform_indices = @transform_0, window_bounds = array<i64: 8, 4>}, {transform_indices = @transform_1, window_bounds = array<i64: 8, 1>}, {transform_indices = @transform_2, window_bounds = array<i64: 1, 1, 4>}, {transform_indices = @transform_3, window_bounds = array<i64: 1, 1, 4>}]} {
    %c0_i32 = arith.constant 0 : i32
    %0 = arith.cmpi eq, %arg1, %c0_i32 : i32
    %1 = arith.extui %0 : i1 to i32
    %c0_i32_0 = arith.constant 0 : i32
    %2 = arith.cmpi ne, %1, %c0_i32_0 : i32
    scf.if %2 {
      %cst_21 = arith.constant 0.000000e+00 : f32
      %35 = vector.broadcast %cst_21 : f32 to vector<1x1x4xf32>
      %c0_22 = arith.constant 0 : index
      %c0_23 = arith.constant 0 : index
      %c0_24 = arith.constant 0 : index
      %36 = vector.load %arg4[%c0_22, %c0_23, %c0_24] : memref<1x1x4xf32, #tpu.memory_space<vmem>>, vector<1x1x4xf32>
      tpu.vector_store %arg4[%c0_22, %c0_23, %c0_24], %35 {strides = array<i32>} : memref<1x1x4xf32, #tpu.memory_space<vmem>>, vector<1x1x4xf32>,
      %cst_25 = arith.constant 0.000000e+00 : f32
      %37 = vector.broadcast %cst_25 : f32 to vector<1x1x4xf32>
      %c0_26 = arith.constant 0 : index
      %c0_27 = arith.constant 0 : index
      %c0_28 = arith.constant 0 : index
      %38 = vector.load %arg5[%c0_26, %c0_27, %c0_28] : memref<1x1x4xf32, #tpu.memory_space<vmem>>, vector<1x1x4xf32>
      tpu.vector_store %arg5[%c0_26, %c0_27, %c0_28], %37 {strides = array<i32>} : memref<1x1x4xf32, #tpu.memory_space<vmem>>, vector<1x1x4xf32>,
    } else {
    }
    %c0 = arith.constant 0 : index
    %c0_1 = arith.constant 0 : index
    %3 = vector.load %arg2[%c0, %c0_1] : memref<8x4xf32, #tpu.memory_space<vmem>>, vector<8x4xf32>
    %c0_2 = arith.constant 0 : index
    %c0_3 = arith.constant 0 : index
    %4 = vector.load %arg3[%c0_2, %c0_3] : memref<8x1xi32, #tpu.memory_space<vmem>>, vector<8x1xi32>
    %5 = tpu.iota {dimensions = array<i32: 1>} : vector<1x4xi32>
    %6 = vector.broadcast %4 : vector<8x1xi32> to vector<8x4xi32>
    %7 = vector.broadcast %5 : vector<1x4xi32> to vector<8x4xi32>
    %8 = arith.cmpi eq, %6, %7 : vector<8x4xi32>
    %9 = arith.extui %8 : vector<8x4xi1> to vector<8x4xi32>
    %10 = arith.sitofp %9 : vector<8x4xi32> to vector<8x4xf32>
    %cst = arith.constant dense<0xFF800000> : vector<8xf32>
    %11 = vector.multi_reduction <maximumf>, %3, %cst [1] : vector<8x4xf32> to vector<8xf32>
    %12 = vector.shape_cast %11 : vector<8xf32> to vector<8x1xf32>
    %13 = vector.broadcast %12 : vector<8x1xf32> to vector<8x4xf32>
    %14 = arith.subf %3, %13 : vector<8x4xf32>
    %15 = math.exp %14 : vector<8x4xf32>
    %cst_4 = arith.constant dense<0.000000e+00> : vector<8xf32>
    %16 = vector.multi_reduction <add>, %15, %cst_4 [1] : vector<8x4xf32> to vector<8xf32>
    %17 = vector.shape_cast %16 : vector<8xf32> to vector<8x1xf32>
    %18 = math.log %17 : vector<8x1xf32>
    %19 = arith.addf %12, %18 : vector<8x1xf32>
    %20 = arith.mulf %10, %3 : vector<8x4xf32>
    %cst_5 = arith.constant dense<0.000000e+00> : vector<8xf32>
    %21 = vector.multi_reduction <add>, %20, %cst_5 [1] : vector<8x4xf32> to vector<8xf32>
    %22 = vector.shape_cast %21 : vector<8xf32> to vector<8x1xf32>
    %23 = arith.subf %19, %22 : vector<8x1xf32>
    %c0_6 = arith.constant 0 : index
    %c0_7 = arith.constant 0 : index
    %c0_8 = arith.constant 0 : index
    %24 = vector.load %arg4[%c0_6, %c0_7, %c0_8] : memref<1x1x4xf32, #tpu.memory_space<vmem>>, vector<1x1x4xf32>
    %cst_9 = arith.constant dense<0.000000e+00> : vector<1x4xf32>
    %25 = tpu.matmul %23, %10, %cst_9 {dimension_numbers = #tpu.dot_dimension_numbers<[0], [0], [1], [1], [0, 1, 1, 1], [], []>, precision = #tpu.contract_precision<fp32>} : vector<8x1xf32>, vector<8x4xf32>, vector<1x4xf32> -> vector<1x4xf32>
    %26 = vector.shape_cast %25 : vector<1x4xf32> to vector<1x1x4xf32>
    %27 = arith.addf %24, %26 : vector<1x1x4xf32>
    %c0_10 = arith.constant 0 : index
    %c0_11 = arith.constant 0 : index
    %c0_12 = arith.constant 0 : index
    %28 = vector.load %arg4[%c0_10, %c0_11, %c0_12] : memref<1x1x4xf32, #tpu.memory_space<vmem>>, vector<1x1x4xf32>
    tpu.vector_store %arg4[%c0_10, %c0_11, %c0_12], %27 {strides = array<i32>} : memref<1x1x4xf32, #tpu.memory_space<vmem>>, vector<1x1x4xf32>,
    %cst_13 = arith.constant 1.000000e+00 : f32
    %29 = vector.broadcast %cst_13 : f32 to vector<8x1xf32>
    %c0_14 = arith.constant 0 : index
    %c0_15 = arith.constant 0 : index
    %c0_16 = arith.constant 0 : index
    %30 = vector.load %arg5[%c0_14, %c0_15, %c0_16] : memref<1x1x4xf32, #tpu.memory_space<vmem>>, vector<1x1x4xf32>
    %cst_17 = arith.constant dense<0.000000e+00> : vector<1x4xf32>
    %31 = tpu.matmul %29, %10, %cst_17 {dimension_numbers = #tpu.dot_dimension_numbers<[0], [0], [1], [1], [0, 1, 1, 1], [], []>} : vector<8x1xf32>, vector<8x4xf32>, vector<1x4xf32> -> vector<1x4xf32>
    %32 = vector.shape_cast %31 : vector<1x4xf32> to vector<1x1x4xf32>
    %33 = arith.addf %30, %32 : vector<1x1x4xf32>
    %c0_18 = arith.constant 0 : index
    %c0_19 = arith.constant 0 : index
    %c0_20 = arith.constant 0 : index
    %34 = vector.load %arg5[%c0_18, %c0_19, %c0_20] : memref<1x1x4xf32, #tpu.memory_space<vmem>>, vector<1x1x4xf32>
    tpu.vector_store %arg5[%c0_18, %c0_19, %c0_20], %33 {strides = array<i32>} : memref<1x1x4xf32, #tpu.memory_space<vmem>>, vector<1x1x4xf32>,
    return
  }
  func.func @transform_0(%arg0: i32, %arg1: i32) -> (i32, i32) {
    %c1_i32 = arith.constant 1 : i32
    %0 = arith.muli %arg0, %c1_i32 : i32
    %1 = arith.addi %0, %arg1 : i32
    %c0_i32 = arith.constant 0 : i32
    %c0_i32_0 = arith.constant 0 : i32
    return %1, %c0_i32 : i32, i32
  }
  func.func @transform_1(%arg0: i32, %arg1: i32) -> (i32, i32) {
    %c1_i32 = arith.constant 1 : i32
    %0 = arith.muli %arg0, %c1_i32 : i32
    %1 = arith.addi %0, %arg1 : i32
    %c0_i32 = arith.constant 0 : i32
    %c0_i32_0 = arith.constant 0 : i32
    return %1, %c0_i32 : i32, i32
  }
  func.func @transform_2(%arg0: i32, %arg1: i32) -> (i32, i32, i32) {
    %c0_i32 = arith.constant 0 : i32
    %c0_i32_0 = arith.constant 0 : i32
    %c0_i32_1 = arith.constant 0 : i32
    return %arg0, %c0_i32, %c0_i32_0 : i32, i32, i32
  }
  func.func @transform_3(%arg0: i32, %arg1: i32) -> (i32, i32, i32) {
    %c0_i32 = arith.constant 0 : i32
    %c0_i32_0 = arith.constant 0 : i32
    %c0_i32_1 = arith.constant 0 : i32
    return %arg0, %c0_i32, %c0_i32_0 : i32, i32, i32
  }
}

</mosaic_0001>

<llo_original>
// kernel: tpu_custom_call.1
$region0: #{tpu_custom_call.1}
  #allocation0 [shape = 'u32[]', space=smem, size = 0x4, offset = 0x4, fixed_abs, tag = 'smem constant byte address 0x4 - core index']
  #allocation1 [shape = 'u32[144,128]{1,0:T(1,128)}', space=vmem, size = 0x12000, scoped, tag = 'internal scratch']
  %s0 = inlined_call_operand.vmem [shape: f32[8,4], index: 0, kind: input, shape index: {}]
  %s1 = inlined_call_operand.vmem [shape: s32[8,1], index: 1, kind: input, shape index: {}]
  %s2 = inlined_call_operand.hbm [shape: f32[1,1,4], index: 2, kind: output, shape index: {0}]
  %s3 = inlined_call_operand.hbm [shape: f32[1,1,4], index: 3, kind: output, shape index: {1}]
  %4 = xla_tuple %s2, %s3
  %s5 = sld [smem:[#allocation0]]
  $region30: #{tpu_custom_call.1} parent=0
    _
  %s7 = ssub.s32 1, %s5
  %s8 = scalar_select 0, %s7, %s5
  $region1: #{tpu_custom_call.1} parent=0
    #allocation2 [shape = 'u8[512]{0}', space=vmem, size = 0x400, scoped, tag = 'output window, operand 0, single buffered']
    #allocation3 [shape = 's32[1]{0}', space=sflag, size = 0x4, scoped, tag = 'scoped memory for tpu_custom_call.1']
    #allocation4 [shape = 'u8[512]{0}', space=vmem, size = 0x400, scoped, tag = 'output window, operand 1, single buffered']
    #allocation5 [shape = 's32[1]{0}', space=sflag, size = 0x4, scoped, tag = 'scoped memory for tpu_custom_call.1']
    %9 = vsyncpa [#allocation3], 0
    %10 = vsyncpa [#allocation5], 0
    // Predicated region
    $region2: #{tpu_custom_call.1} parent=1 // pred_check
      _
    $region3: #{tpu_custom_call.1} parent=1 // pred_check_branch
      %12 = sbr.rel (0) target = $region5
    $region4: #{tpu_custom_call.1} parent=1 // pred_region
      %s13 = sadd.s32 0, 0
      %p14 = scmp.lt.s32.totalorder %s13, 0
      %s15 = scalar_select %p14, %s13, 0
      %s16 = smul.addr %s15, 8
      %s17 = scalar_lea.vmem %s0, %s16
      %s18 = sadd.s32 0, 0
    $region5: #{tpu_custom_call.1} parent=1 // pred_fallthru
      _
    // Predicated region
    $region6: #{tpu_custom_call.1} parent=1 // pred_check
      _
    $region7: #{tpu_custom_call.1} parent=1 // pred_check_branch
      %20 = sbr.rel (0) target = $region9
    $region8: #{tpu_custom_call.1} parent=1 // pred_region
      %s21 = sadd.s32 0, 0
      %p22 = scmp.lt.s32.totalorder %s21, 0
      %s23 = scalar_select %p22, %s21, 0
      %s24 = smul.addr %s23, 8
      %s25 = scalar_lea.vmem %s1, %s24
      %s26 = sadd.s32 0, 0
    $region9: #{tpu_custom_call.1} parent=1 // pred_fallthru
      _
    %s27 = sadd.s32 0, 0
    %p28 = scmp.lt.s32.totalorder %s27, 0
    %s29 = scalar_select %p28, %s27, 0
    %s30 = smul.addr %s29, 8
    %s31 = scalar_lea.vmem %s0, %s30
    %s32 = sadd.s32 0, 0
    %p33 = scmp.lt.s32.totalorder %s32, 0
    %s34 = scalar_select %p33, %s32, 0
    %s35 = smul.addr %s34, 8
    %s36 = scalar_lea.vmem %s1, %s35
    %s37 = sadd.s32 0, 0
    %p38 = scmp.lt.s32.totalorder %s37, 0
    %s39 = scalar_select %p38, %s37, 0
    %s40 = smul.addr %s39, 8
    %s41 = scalar_lea.vmem %s0, %s40
    %s42 = sadd.s32 0, 0
    %s43 = sadd.s32 0, 0
    %p44 = scmp.lt.s32.totalorder %s43, 0
    %s45 = scalar_select %p44, %s43, 0
    %s46 = smul.addr %s45, 8
    %s47 = scalar_lea.vmem %s1, %s46
    %s48 = sadd.s32 0, 0
    %p49 = scmp.eq.s32.totalorder 0, 0
    // Predicated region
    $region10: #{tpu_custom_call.1} parent=1 // pred_check
      %p50 = pneg %p49
    $region11: #{tpu_custom_call.1} parent=1 // pred_check_branch
      %52 = sbr.rel (%p50) target = $region13
    $region12: #{tpu_custom_call.1} parent=1 // pred_region
      %vm53 = vcmask 24576
      %54 = vst.msk [vmem:[#allocation2] sm:$0x1] %vm53, 0.0
      %55 = vst.msk [vmem:[#allocation4] sm:$0x1] %vm53, 0.0
    $region13: #{tpu_custom_call.1} parent=1 // pred_fallthru
      _
    %v56 = vld [vmem:[%s41] sm:$0xff]
    %v57 = vld [vmem:[%s47] sm:$0xff]
    %v58 = vlaneseq
    %v59 = vand.u32 %v58, 127
    %60 = vset.pattern.permute.xlu0 0
    %61 = vperm.xlu0 %60, %v57
    %v62 = vpop.permute.xlu0 %61
    %vm63 = vcmp.eq.s32.totalorder %v62, %v59
    %v64 = vsel %vm63, 1, 0
    %v65 = vcvt.s32.f32 %v64
    %vm66 = vcmask 31744
    %v67 = vsel %vm66, %v56, -inf
    %68 = vmax.xlane.f32.xlu0 %v67
    %v69 = vpop.xlane.xlu0 %68
    %v70 = vsub.f32 %v56, %v69
    %v71 = vmul.f32 %v70, 1.442695
    %v72 = vpow.pop %v71
    %v73 = vsel %vm66, %v72, 0.0
    %74 = vadd.xlane.f32.xlu0 %v73
    %v75 = vpop.xlane.xlu0 %74
    %v76 = vlog2.pop %v75
    %v77 = vmul.f32 %v76, 0.6931472
    %v78 = vadd.f32 %v69, %v77
    %v79 = vmul.f32 %v65, %v56
    %v80 = vsel %vm66, %v79, 0.0
    %81 = vadd.xlane.f32.xlu0 %v80
    %v82 = vpop.xlane.xlu0 %81
    %v83 = vsub.f32 %v78, %v82
    %v84 = vld [vmem:[#allocation2] sm:$0x1]
    %85 = vxpose.xlu0.b32.start [1/16] %v83, 128
    %86 = vxpose.xlu0.b32.cont [2/16] 0.0, 128
    %87 = vxpose.xlu0.b32.cont [3/16] 0.0, 128
    %88 = vxpose.xlu0.b32.cont [4/16] 0.0, 128
    %89 = vxpose.xlu0.b32.cont [5/16] 0.0, 128
    %90 = vxpose.xlu0.b32.cont [6/16] 0.0, 128
    %91 = vxpose.xlu0.b32.cont [7/16] 0.0, 128
    %92 = vxpose.xlu0.b32.cont [8/16] 0.0, 128
    %93 = vxpose.xlu0.b32.cont [9/16] 0.0, 128
    %94 = vxpose.xlu0.b32.cont [10/16] 0.0, 128
    %95 = vxpose.xlu0.b32.cont [11/16] 0.0, 128
    %96 = vxpose.xlu0.b32.cont [12/16] 0.0, 128
    %97 = vxpose.xlu0.b32.cont [13/16] 0.0, 128
    %98 = vxpose.xlu0.b32.cont [14/16] 0.0, 128
    %99 = vxpose.xlu0.b32.cont [15/16] 0.0, 128
    %100 = vxpose.xlu0.b32.end [16/16] 0.0, 128
    %v101 = vpop.trf.xlu0
    %v102 = vpop.trf.xlu0
    %v103 = vpop.trf.xlu0
    %v104 = vpop.trf.xlu0
    %v105 = vpop.trf.xlu0
    %v106 = vpop.trf.xlu0
    %v107 = vpop.trf.xlu0
    %v108 = vpop.trf.xlu0
    %v109 = vpop.trf.xlu0
    %v110 = vpop.trf.xlu0
    %v111 = vpop.trf.xlu0
    %v112 = vpop.trf.xlu0
    %v113 = vpop.trf.xlu0
    %v114 = vpop.trf.xlu0
    %v115 = vpop.trf.xlu0
    %v116 = vpop.trf.xlu0
    %vm117 = vcmask 64512
    %v119 = vsel %vm117, %v101, 0
    %121 = vmatprep.subr.mxu0 0.0
    %v122 = vand.u32 %v65, 4294901760
    %123 = vmatpush1.msra.mxu0 %v122
    %124 = vmatprep.subr.mxu0 0.0
    %125 = vmatpush1.msra.mxu0 0.0
    %126 = vmatprep.subr.mxu0 0.0
    %127 = vmatpush1.msra.mxu0 0.0
    %128 = vmatprep.subr.mxu0 0.0
    %129 = vmatpush1.msra.mxu0 0.0
    %130 = vmatprep.subr.mxu0 0.0
    %131 = vmatpush1.msra.mxu0 0.0
    %132 = vmatprep.subr.mxu0 0.0
    %133 = vmatpush1.msra.mxu0 0.0
    %134 = vmatprep.subr.mxu0 0.0
    %135 = vmatpush1.msra.mxu0 0.0
    %136 = vmatprep.subr.mxu0 0.0
    %137 = vmatpush1.msra.mxu0 0.0
    %138 = vmatprep.subr.mxu0 0.0
    %139 = vmatpush1.msra.mxu0 0.0
    %140 = vmatprep.subr.mxu0 0.0
    %141 = vmatpush1.msra.mxu0 0.0
    %142 = vmatprep.subr.mxu0 0.0
    %143 = vmatpush1.msra.mxu0 0.0
    %144 = vmatprep.subr.mxu0 0.0
    %145 = vmatpush1.msra.mxu0 0.0
    %146 = vmatprep.subr.mxu0 0.0
    %147 = vmatpush1.msra.mxu0 0.0
    %148 = vmatprep.subr.mxu0 0.0
    %149 = vmatpush1.msra.mxu0 0.0
    %150 = vmatprep.subr.mxu0 0.0
    %151 = vmatpush1.msra.mxu0 0.0
    %152 = vmatprep.subr.mxu0 0.0
    %153 = vmatpush1.msra.mxu0 0.0
    %154 = vmatprep.subr.mxu0 0.0
    %155 = vmatpush1.msra.mxu0 0.0
    %156 = vmatprep.subr.mxu0 0.0
    %157 = vmatpush1.msra.mxu0 0.0
    %158 = vmatprep.subr.mxu0 0.0
    %159 = vmatpush1.msra.mxu0 0.0
    %160 = vmatprep.subr.mxu0 0.0
    %161 = vmatpush1.msra.mxu0 0.0
    %162 = vmatprep.subr.mxu0 0.0
    %163 = vmatpush1.msra.mxu0 0.0
    %164 = vmatprep.subr.mxu0 0.0
    %165 = vmatpush1.msra.mxu0 0.0
    %166 = vmatprep.subr.mxu0 0.0
    %167 = vmatpush1.msra.mxu0 0.0
    %168 = vmatprep.subr.mxu0 0.0
    %169 = vmatpush1.msra.mxu0 0.0
    %170 = vmatprep.subr.mxu0 0.0
    %171 = vmatpush1.msra.mxu0 0.0
    %172 = vmatprep.subr.mxu0 0.0
    %173 = vmatpush1.msra.mxu0 0.0
    %174 = vmatprep.subr.mxu0 0.0
    %175 = vmatpush1.msra.mxu0 0.0
    %176 = vmatprep.subr.mxu0 0.0
    %177 = vmatpush1.msra.mxu0 0.0
    %178 = vmatprep.subr.mxu0 0.0
    %179 = vmatpush1.msra.mxu0 0.0
    %180 = vmatprep.subr.mxu0 0.0
    %181 = vmatpush1.msra.mxu0 0.0
    %182 = vmatprep.subr.mxu0 0.0
    %183 = vmatpush1.msra.mxu0 0.0
    %184 = vmatprep.subr.mxu0 0.0
    %185 = vmatpush1.msra.mxu0 0.0
    %186 = vmatprep.mubr.f32.mxu0 0.0
    %v187 = vand.u32 %v119, 4294901760
    %v188 = vsub.f32 %v119, %v187
    %v189 = vand.u32 %v188, 4294901760
    %v190 = vsub.f32 %v188, %v189
    %v191 = vand.u32 %v190, 4294901760
    %192 = vmatmul.mubr.f32.gmra.mrb[0].mxu0 %v191
    %v193 = vpop.f32.mrb[0].mxu0
    %v194 = vadd.f32 0.0, %v193
    %v195 = vpop.f32.mrb[0].mxu0
    %196 = vdwg.mxu0
    %197 = vmatprep.subr.mxu0 0.0
    %v198 = vand.u32 %v65, 4294901760
    %v199 = vsub.f32 %v65, %v198
    %v200 = vand.u32 %v199, 4294901760
    %v201 = vsub.f32 %v199, %v200
    %v202 = vand.u32 %v201, 4294901760
    %203 = vmatpush1.msra.mxu0 %v202
    %204 = vmatprep.subr.mxu0 0.0
    %205 = vmatpush1.msra.mxu0 0.0
    %206 = vmatprep.subr.mxu0 0.0
    %207 = vmatpush1.msra.mxu0 0.0
    %208 = vmatprep.subr.mxu0 0.0
    %209 = vmatpush1.msra.mxu0 0.0
    %210 = vmatprep.subr.mxu0 0.0
    %211 = vmatpush1.msra.mxu0 0.0
    %212 = vmatprep.subr.mxu0 0.0
    %213 = vmatpush1.msra.mxu0 0.0
    %214 = vmatprep.subr.mxu0 0.0
    %215 = vmatpush1.msra.mxu0 0.0
    %216 = vmatprep.subr.mxu0 0.0
    %217 = vmatpush1.msra.mxu0 0.0
    %218 = vmatprep.subr.mxu0 0.0
    %219 = vmatpush1.msra.mxu0 0.0
    %220 = vmatprep.subr.mxu0 0.0
    %221 = vmatpush1.msra.mxu0 0.0
    %222 = vmatprep.subr.mxu0 0.0
    %223 = vmatpush1.msra.mxu0 0.0
    %224 = vmatprep.subr.mxu0 0.0
    %225 = vmatpush1.msra.mxu0 0.0
    %226 = vmatprep.subr.mxu0 0.0
    %227 = vmatpush1.msra.mxu0 0.0
    %228 = vmatprep.subr.mxu0 0.0
    %229 = vmatpush1.msra.mxu0 0.0
    %230 = vmatprep.subr.mxu0 0.0
    %231 = vmatpush1.msra.mxu0 0.0
    %232 = vmatprep.subr.mxu0 0.0
    %233 = vmatpush1.msra.mxu0 0.0
    %234 = vmatprep.subr.mxu0 0.0
    %235 = vmatpush1.msra.mxu0 0.0
    %236 = vmatprep.subr.mxu0 0.0
    %237 = vmatpush1.msra.mxu0 0.0
    %238 = vmatprep.subr.mxu0 0.0
    %239 = vmatpush1.msra.mxu0 0.0
    %240 = vmatprep.subr.mxu0 0.0
    %241 = vmatpush1.msra.mxu0 0.0
    %242 = vmatprep.subr.mxu0 0.0
    %243 = vmatpush1.msra.mxu0 0.0
    %244 = vmatprep.subr.mxu0 0.0
    %245 = vmatpush1.msra.mxu0 0.0
    %246 = vmatprep.subr.mxu0 0.0
    %247 = vmatpush1.msra.mxu0 0.0
    %248 = vmatprep.subr.mxu0 0.0
    %249 = vmatpush1.msra.mxu0 0.0
    %250 = vmatprep.subr.mxu0 0.0
    %251 = vmatpush1.msra.mxu0 0.0
    %252 = vmatprep.subr.mxu0 0.0
    %253 = vmatpush1.msra.mxu0 0.0
    %254 = vmatprep.subr.mxu0 0.0
    %255 = vmatpush1.msra.mxu0 0.0
    %256 = vmatprep.subr.mxu0 0.0
    %257 = vmatpush1.msra.mxu0 0.0
    %258 = vmatprep.subr.mxu0 0.0
    %259 = vmatpush1.msra.mxu0 0.0
    %260 = vmatprep.subr.mxu0 0.0
    %261 = vmatpush1.msra.mxu0 0.0
    %262 = vmatprep.subr.mxu0 0.0
    %263 = vmatpush1.msra.mxu0 0.0
    %264 = vmatprep.subr.mxu0 0.0
    %265 = vmatpush1.msra.mxu0 0.0
    %266 = vmatprep.mubr.f32.mxu0 0.0
    %v267 = vand.u32 %v119, 4294901760
    %268 = vmatmul.mubr.f32.gmra.mrb[0].mxu0 %v267
    %v269 = vpop.f32.mrb[0].mxu0
    %v270 = vadd.f32 %v194, %v269
    %v271 = vpop.f32.mrb[0].mxu0
    %272 = vdwg.mxu0
    %273 = vmatprep.subr.mxu0 0.0
    %v274 = vand.u32 %v65, 4294901760
    %v275 = vsub.f32 %v65, %v274
    %276 = vmatpush1.msra.mxu0 %v275
    %277 = vmatprep.subr.mxu0 0.0
    %278 = vmatpush1.msra.mxu0 0.0
    %279 = vmatprep.subr.mxu0 0.0
    %280 = vmatpush1.msra.mxu0 0.0
    %281 = vmatprep.subr.mxu0 0.0
    %282 = vmatpush1.msra.mxu0 0.0
    %283 = vmatprep.subr.mxu0 0.0
    %284 = vmatpush1.msra.mxu0 0.0
    %285 = vmatprep.subr.mxu0 0.0
    %286 = vmatpush1.msra.mxu0 0.0
    %287 = vmatprep.subr.mxu0 0.0
    %288 = vmatpush1.msra.mxu0 0.0
    %289 = vmatprep.subr.mxu0 0.0
    %290 = vmatpush1.msra.mxu0 0.0
    %291 = vmatprep.subr.mxu0 0.0
    %292 = vmatpush1.msra.mxu0 0.0
    %293 = vmatprep.subr.mxu0 0.0
    %294 = vmatpush1.msra.mxu0 0.0
    %295 = vmatprep.subr.mxu0 0.0
    %296 = vmatpush1.msra.mxu0 0.0
    %297 = vmatprep.subr.mxu0 0.0
    %298 = vmatpush1.msra.mxu0 0.0
    %299 = vmatprep.subr.mxu0 0.0
    %300 = vmatpush1.msra.mxu0 0.0
    %301 = vmatprep.subr.mxu0 0.0
    %302 = vmatpush1.msra.mxu0 0.0
    %303 = vmatprep.subr.mxu0 0.0
    %304 = vmatpush1.msra.mxu0 0.0
    %305 = vmatprep.subr.mxu0 0.0
    %306 = vmatpush1.msra.mxu0 0.0
    %307 = vmatprep.subr.mxu0 0.0
    %308 = vmatpush1.msra.mxu0 0.0
    %309 = vmatprep.subr.mxu0 0.0
    %310 = vmatpush1.msra.mxu0 0.0
    %311 = vmatprep.subr.mxu0 0.0
    %312 = vmatpush1.msra.mxu0 0.0
    %313 = vmatprep.subr.mxu0 0.0
    %314 = vmatpush1.msra.mxu0 0.0
    %315 = vmatprep.subr.mxu0 0.0
    %316 = vmatpush1.msra.mxu0 0.0
    %317 = vmatprep.subr.mxu0 0.0
    %318 = vmatpush1.msra.mxu0 0.0
    %319 = vmatprep.subr.mxu0 0.0
    %320 = vmatpush1.msra.mxu0 0.0
    %321 = vmatprep.subr.mxu0 0.0
    %322 = vmatpush1.msra.mxu0 0.0
    %323 = vmatprep.subr.mxu0 0.0
    %324 = vmatpush1.msra.mxu0 0.0
    %325 = vmatprep.subr.mxu0 0.0
    %326 = vmatpush1.msra.mxu0 0.0
    %327 = vmatprep.subr.mxu0 0.0
    %328 = vmatpush1.msra.mxu0 0.0
    %329 = vmatprep.subr.mxu0 0.0
    %330 = vmatpush1.msra.mxu0 0.0
    %331 = vmatprep.subr.mxu0 0.0
    %332 = vmatpush1.msra.mxu0 0.0
    %333 = vmatprep.subr.mxu0 0.0
    %334 = vmatpush1.msra.mxu0 0.0
    %335 = vmatprep.subr.mxu0 0.0
    %336 = vmatpush1.msra.mxu0 0.0
    %337 = vmatprep.subr.mxu0 0.0
    %338 = vmatpush1.msra.mxu0 0.0
    %339 = vmatprep.mubr.f32.mxu0 0.0
    %v340 = vand.u32 %v119, 4294901760
    %v341 = vsub.f32 %v119, %v340
    %342 = vmatmul.mubr.f32.gmra.mrb[0].mxu0 %v341
    %v343 = vpop.f32.mrb[0].mxu0
    %v344 = vadd.f32 %v270, %v343
    %v345 = vpop.f32.mrb[0].mxu0
    %346 = vdwg.mxu0
    %347 = vmatprep.subr.mxu0 0.0
    %v348 = vand.u32 %v65, 4294901760
    %349 = vmatpush1.msra.mxu0 %v348
    %350 = vmatprep.subr.mxu0 0.0
    %351 = vmatpush1.msra.mxu0 0.0
    %352 = vmatprep.subr.mxu0 0.0
    %353 = vmatpush1.msra.mxu0 0.0
    %354 = vmatprep.subr.mxu0 0.0
    %355 = vmatpush1.msra.mxu0 0.0
    %356 = vmatprep.subr.mxu0 0.0
    %357 = vmatpush1.msra.mxu0 0.0
    %358 = vmatprep.subr.mxu0 0.0
    %359 = vmatpush1.msra.mxu0 0.0
    %360 = vmatprep.subr.mxu0 0.0
    %361 = vmatpush1.msra.mxu0 0.0
    %362 = vmatprep.subr.mxu0 0.0
    %363 = vmatpush1.msra.mxu0 0.0
    %364 = vmatprep.subr.mxu0 0.0
    %365 = vmatpush1.msra.mxu0 0.0
    %366 = vmatprep.subr.mxu0 0.0
    %367 = vmatpush1.msra.mxu0 0.0
    %368 = vmatprep.subr.mxu0 0.0
    %369 = vmatpush1.msra.mxu0 0.0
    %370 = vmatprep.subr.mxu0 0.0
    %371 = vmatpush1.msra.mxu0 0.0
    %372 = vmatprep.subr.mxu0 0.0
    %373 = vmatpush1.msra.mxu0 0.0
    %374 = vmatprep.subr.mxu0 0.0
    %375 = vmatpush1.msra.mxu0 0.0
    %376 = vmatprep.subr.mxu0 0.0
    %377 = vmatpush1.msra.mxu0 0.0
    %378 = vmatprep.subr.mxu0 0.0
    %379 = vmatpush1.msra.mxu0 0.0
    %380 = vmatprep.subr.mxu0 0.0
    %381 = vmatpush1.msra.mxu0 0.0
    %382 = vmatprep.subr.mxu0 0.0
    %383 = vmatpush1.msra.mxu0 0.0
    %384 = vmatprep.subr.mxu0 0.0
    %385 = vmatpush1.msra.mxu0 0.0
    %386 = vmatprep.subr.mxu0 0.0
    %387 = vmatpush1.msra.mxu0 0.0
    %388 = vmatprep.subr.mxu0 0.0
    %389 = vmatpush1.msra.mxu0 0.0
    %390 = vmatprep.subr.mxu0 0.0
    %391 = vmatpush1.msra.mxu0 0.0
    %392 = vmatprep.subr.mxu0 0.0
    %393 = vmatpush1.msra.mxu0 0.0
    %394 = vmatprep.subr.mxu0 0.0
    %395 = vmatpush1.msra.mxu0 0.0
    %396 = vmatprep.subr.mxu0 0.0
    %397 = vmatpush1.msra.mxu0 0.0
    %398 = vmatprep.subr.mxu0 0.0
    %399 = vmatpush1.msra.mxu0 0.0
    %400 = vmatprep.subr.mxu0 0.0
    %401 = vmatpush1.msra.mxu0 0.0
    %402 = vmatprep.subr.mxu0 0.0
    %403 = vmatpush1.msra.mxu0 0.0
    %404 = vmatprep.subr.mxu0 0.0
    %405 = vmatpush1.msra.mxu0 0.0
    %406 = vmatprep.subr.mxu0 0.0
    %407 = vmatpush1.msra.mxu0 0.0
    %408 = vmatprep.subr.mxu0 0.0
    %409 = vmatpush1.msra.mxu0 0.0
    %410 = vmatprep.subr.mxu0 0.0
    %411 = vmatpush1.msra.mxu0 0.0
    %412 = vmatprep.mubr.f32.mxu0 0.0
    %v413 = vand.u32 %v119, 4294901760
    %v414 = vsub.f32 %v119, %v413
    %v415 = vand.u32 %v414, 4294901760
    %416 = vmatmul.mubr.f32.gmra.mrb[0].mxu0 %v415
    %v417 = vpop.f32.mrb[0].mxu0
    %v418 = vadd.f32 %v344, %v417
    %v419 = vpop.f32.mrb[0].mxu0
    %420 = vdwg.mxu0
    %421 = vmatprep.subr.mxu0 0.0
    %v422 = vand.u32 %v65, 4294901760
    %v423 = vsub.f32 %v65, %v422
    %v424 = vand.u32 %v423, 4294901760
    %425 = vmatpush1.msra.mxu0 %v424
    %426 = vmatprep.subr.mxu0 0.0
    %427 = vmatpush1.msra.mxu0 0.0
    %428 = vmatprep.subr.mxu0 0.0
    %429 = vmatpush1.msra.mxu0 0.0
    %430 = vmatprep.subr.mxu0 0.0
    %431 = vmatpush1.msra.mxu0 0.0
    %432 = vmatprep.subr.mxu0 0.0
    %433 = vmatpush1.msra.mxu0 0.0
    %434 = vmatprep.subr.mxu0 0.0
    %435 = vmatpush1.msra.mxu0 0.0
    %436 = vmatprep.subr.mxu0 0.0
    %437 = vmatpush1.msra.mxu0 0.0
    %438 = vmatprep.subr.mxu0 0.0
    %439 = vmatpush1.msra.mxu0 0.0
    %440 = vmatprep.subr.mxu0 0.0
    %441 = vmatpush1.msra.mxu0 0.0
    %442 = vmatprep.subr.mxu0 0.0
    %443 = vmatpush1.msra.mxu0 0.0
    %444 = vmatprep.subr.mxu0 0.0
    %445 = vmatpush1.msra.mxu0 0.0
    %446 = vmatprep.subr.mxu0 0.0
    %447 = vmatpush1.msra.mxu0 0.0
    %448 = vmatprep.subr.mxu0 0.0
    %449 = vmatpush1.msra.mxu0 0.0
    %450 = vmatprep.subr.mxu0 0.0
    %451 = vmatpush1.msra.mxu0 0.0
    %452 = vmatprep.subr.mxu0 0.0
    %453 = vmatpush1.msra.mxu0 0.0
    %454 = vmatprep.subr.mxu0 0.0
    %455 = vmatpush1.msra.mxu0 0.0
    %456 = vmatprep.subr.mxu0 0.0
    %457 = vmatpush1.msra.mxu0 0.0
    %458 = vmatprep.subr.mxu0 0.0
    %459 = vmatpush1.msra.mxu0 0.0
    %460 = vmatprep.subr.mxu0 0.0
    %461 = vmatpush1.msra.mxu0 0.0
    %462 = vmatprep.subr.mxu0 0.0
    %463 = vmatpush1.msra.mxu0 0.0
    %464 = vmatprep.subr.mxu0 0.0
    %465 = vmatpush1.msra.mxu0 0.0
    %466 = vmatprep.subr.mxu0 0.0
    %467 = vmatpush1.msra.mxu0 0.0
    %468 = vmatprep.subr.mxu0 0.0
    %469 = vmatpush1.msra.mxu0 0.0
    %470 = vmatprep.subr.mxu0 0.0
    %471 = vmatpush1.msra.mxu0 0.0
    %472 = vmatprep.subr.mxu0 0.0
    %473 = vmatpush1.msra.mxu0 0.0
    %474 = vmatprep.subr.mxu0 0.0
    %475 = vmatpush1.msra.mxu0 0.0
    %476 = vmatprep.subr.mxu0 0.0
    %477 = vmatpush1.msra.mxu0 0.0
    %478 = vmatprep.subr.mxu0 0.0
    %479 = vmatpush1.msra.mxu0 0.0
    %480 = vmatprep.subr.mxu0 0.0
    %481 = vmatpush1.msra.mxu0 0.0
    %482 = vmatprep.subr.mxu0 0.0
    %483 = vmatpush1.msra.mxu0 0.0
    %484 = vmatprep.subr.mxu0 0.0
    %485 = vmatpush1.msra.mxu0 0.0
    %486 = vmatprep.subr.mxu0 0.0
    %487 = vmatpush1.msra.mxu0 0.0
    %488 = vmatprep.mubr.f32.mxu0 0.0
    %v489 = vand.u32 %v119, 4294901760
    %490 = vmatmul.mubr.f32.gmra.mrb[0].mxu0 %v489
    %v491 = vpop.f32.mrb[0].mxu0
    %v492 = vadd.f32 %v418, %v491
    %v493 = vpop.f32.mrb[0].mxu0
    %494 = vdwg.mxu0
    %495 = vmatprep.subr.mxu0 0.0
    %v496 = vand.u32 %v65, 4294901760
    %497 = vmatpush1.msra.mxu0 %v496
    %498 = vmatprep.subr.mxu0 0.0
    %499 = vmatpush1.msra.mxu0 0.0
    %500 = vmatprep.subr.mxu0 0.0
    %501 = vmatpush1.msra.mxu0 0.0
    %502 = vmatprep.subr.mxu0 0.0
    %503 = vmatpush1.msra.mxu0 0.0
    %504 = vmatprep.subr.mxu0 0.0
    %505 = vmatpush1.msra.mxu0 0.0
    %506 = vmatprep.subr.mxu0 0.0
    %507 = vmatpush1.msra.mxu0 0.0
    %508 = vmatprep.subr.mxu0 0.0
    %509 = vmatpush1.msra.mxu0 0.0
    %510 = vmatprep.subr.mxu0 0.0
    %511 = vmatpush1.msra.mxu0 0.0
    %512 = vmatprep.subr.mxu0 0.0
    %513 = vmatpush1.msra.mxu0 0.0
    %514 = vmatprep.subr.mxu0 0.0
    %515 = vmatpush1.msra.mxu0 0.0
    %516 = vmatprep.subr.mxu0 0.0
    %517 = vmatpush1.msra.mxu0 0.0
    %518 = vmatprep.subr.mxu0 0.0
    %519 = vmatpush1.msra.mxu0 0.0
    %520 = vmatprep.subr.mxu0 0.0
    %521 = vmatpush1.msra.mxu0 0.0
    %522 = vmatprep.subr.mxu0 0.0
    %523 = vmatpush1.msra.mxu0 0.0
    %524 = vmatprep.subr.mxu0 0.0
    %525 = vmatpush1.msra.mxu0 0.0
    %526 = vmatprep.subr.mxu0 0.0
    %527 = vmatpush1.msra.mxu0 0.0
    %528 = vmatprep.subr.mxu0 0.0
    %529 = vmatpush1.msra.mxu0 0.0
    %530 = vmatprep.subr.mxu0 0.0
    %531 = vmatpush1.msra.mxu0 0.0
    %532 = vmatprep.subr.mxu0 0.0
    %533 = vmatpush1.msra.mxu0 0.0
    %534 = vmatprep.subr.mxu0 0.0
    %535 = vmatpush1.msra.mxu0 0.0
    %536 = vmatprep.subr.mxu0 0.0
    %537 = vmatpush1.msra.mxu0 0.0
    %538 = vmatprep.subr.mxu0 0.0
    %539 = vmatpush1.msra.mxu0 0.0
    %540 = vmatprep.subr.mxu0 0.0
    %541 = vmatpush1.msra.mxu0 0.0
    %542 = vmatprep.subr.mxu0 0.0
    %543 = vmatpush1.msra.mxu0 0.0
    %544 = vmatprep.subr.mxu0 0.0
    %545 = vmatpush1.msra.mxu0 0.0
    %546 = vmatprep.subr.mxu0 0.0
    %547 = vmatpush1.msra.mxu0 0.0
    %548 = vmatprep.subr.mxu0 0.0
    %549 = vmatpush1.msra.mxu0 0.0
    %550 = vmatprep.subr.mxu0 0.0
    %551 = vmatpush1.msra.mxu0 0.0
    %552 = vmatprep.subr.mxu0 0.0
    %553 = vmatpush1.msra.mxu0 0.0
    %554 = vmatprep.subr.mxu0 0.0
    %555 = vmatpush1.msra.mxu0 0.0
    %556 = vmatprep.subr.mxu0 0.0
    %557 = vmatpush1.msra.mxu0 0.0
    %558 = vmatprep.subr.mxu0 0.0
    %559 = vmatpush1.msra.mxu0 0.0
    %560 = vmatprep.mubr.f32.mxu0 0.0
    %v561 = vand.u32 %v119, 4294901760
    %562 = vmatmul.mubr.f32.gmra.mrb[0].mxu0 %v561
    %v563 = vpop.f32.mrb[0].mxu0
    %v564 = vadd.f32 %v492, %v563
    %v565 = vpop.f32.mrb[0].mxu0
    %566 = vdwg.mxu0
    %v567 = vadd.f32 %v84, %v564
    %vm568 = vcmask 24576
    %569 = vst.msk [vmem:[#allocation2] sm:$0x1] %vm568, %v567
    %v570 = vld [vmem:[#allocation4] sm:$0x1]
    %571 = vxpose.xlu0.b32.start [1/16] 1.0, 128
    %572 = vxpose.xlu0.b32.cont [2/16] 0.0, 128
    %573 = vxpose.xlu0.b32.cont [3/16] 0.0, 128
    %574 = vxpose.xlu0.b32.cont [4/16] 0.0, 128
    %575 = vxpose.xlu0.b32.cont [5/16] 0.0, 128
    %576 = vxpose.xlu0.b32.cont [6/16] 0.0, 128
    %577 = vxpose.xlu0.b32.cont [7/16] 0.0, 128
    %578 = vxpose.xlu0.b32.cont [8/16] 0.0, 128
    %579 = vxpose.xlu0.b32.cont [9/16] 0.0, 128
    %580 = vxpose.xlu0.b32.cont [10/16] 0.0, 128
    %581 = vxpose.xlu0.b32.cont [11/16] 0.0, 128
    %582 = vxpose.xlu0.b32.cont [12/16] 0.0, 128
    %583 = vxpose.xlu0.b32.cont [13/16] 0.0, 128
    %584 = vxpose.xlu0.b32.cont [14/16] 0.0, 128
    %585 = vxpose.xlu0.b32.cont [15/16] 0.0, 128
    %586 = vxpose.xlu0.b32.end [16/16] 0.0, 128
    %v587 = vpop.trf.xlu0
    %v588 = vpop.trf.xlu0
    %v589 = vpop.trf.xlu0
    %v590 = vpop.trf.xlu0
    %v591 = vpop.trf.xlu0
    %v592 = vpop.trf.xlu0
    %v593 = vpop.trf.xlu0
    %v594 = vpop.trf.xlu0
    %v595 = vpop.trf.xlu0
    %v596 = vpop.trf.xlu0
    %v597 = vpop.trf.xlu0
    %v598 = vpop.trf.xlu0
    %v599 = vpop.trf.xlu0
    %v600 = vpop.trf.xlu0
    %v601 = vpop.trf.xlu0
    %v602 = vpop.trf.xlu0
    %v604 = vsel %vm117, %v587, 0
    %606 = vmatprep.subr.mxu0 0.0
    %607 = vmatpush1.msra.mxu0 %v65
    %608 = vmatprep.subr.mxu0 0.0
    %609 = vmatpush1.msra.mxu0 0.0
    %610 = vmatprep.subr.mxu0 0.0
    %611 = vmatpush1.msra.mxu0 0.0
    %612 = vmatprep.subr.mxu0 0.0
    %613 = vmatpush1.msra.mxu0 0.0
    %614 = vmatprep.subr.mxu0 0.0
    %615 = vmatpush1.msra.mxu0 0.0
    %616 = vmatprep.subr.mxu0 0.0
    %617 = vmatpush1.msra.mxu0 0.0
    %618 = vmatprep.subr.mxu0 0.0
    %619 = vmatpush1.msra.mxu0 0.0
    %620 = vmatprep.subr.mxu0 0.0
    %621 = vmatpush1.msra.mxu0 0.0
    %622 = vmatprep.subr.mxu0 0.0
    %623 = vmatpush1.msra.mxu0 0.0
    %624 = vmatprep.subr.mxu0 0.0
    %625 = vmatpush1.msra.mxu0 0.0
    %626 = vmatprep.subr.mxu0 0.0
    %627 = vmatpush1.msra.mxu0 0.0
    %628 = vmatprep.subr.mxu0 0.0
    %629 = vmatpush1.msra.mxu0 0.0
    %630 = vmatprep.subr.mxu0 0.0
    %631 = vmatpush1.msra.mxu0 0.0
    %632 = vmatprep.subr.mxu0 0.0
    %633 = vmatpush1.msra.mxu0 0.0
    %634 = vmatprep.subr.mxu0 0.0
    %635 = vmatpush1.msra.mxu0 0.0
    %636 = vmatprep.subr.mxu0 0.0
    %637 = vmatpush1.msra.mxu0 0.0
    %638 = vmatprep.subr.mxu0 0.0
    %639 = vmatpush1.msra.mxu0 0.0
    %640 = vmatprep.subr.mxu0 0.0
    %641 = vmatpush1.msra.mxu0 0.0
    %642 = vmatprep.subr.mxu0 0.0
    %643 = vmatpush1.msra.mxu0 0.0
    %644 = vmatprep.subr.mxu0 0.0
    %645 = vmatpush1.msra.mxu0 0.0
    %646 = vmatprep.subr.mxu0 0.0
    %647 = vmatpush1.msra.mxu0 0.0
    %648 = vmatprep.subr.mxu0 0.0
    %649 = vmatpush1.msra.mxu0 0.0
    %650 = vmatprep.subr.mxu0 0.0
    %651 = vmatpush1.msra.mxu0 0.0
    %652 = vmatprep.subr.mxu0 0.0
    %653 = vmatpush1.msra.mxu0 0.0
    %654 = vmatprep.subr.mxu0 0.0
    %655 = vmatpush1.msra.mxu0 0.0
    %656 = vmatprep.subr.mxu0 0.0
    %657 = vmatpush1.msra.mxu0 0.0
    %658 = vmatprep.subr.mxu0 0.0
    %659 = vmatpush1.msra.mxu0 0.0
    %660 = vmatprep.subr.mxu0 0.0
    %661 = vmatpush1.msra.mxu0 0.0
    %662 = vmatprep.subr.mxu0 0.0
    %663 = vmatpush1.msra.mxu0 0.0
    %664 = vmatprep.subr.mxu0 0.0
    %665 = vmatpush1.msra.mxu0 0.0
    %666 = vmatprep.subr.mxu0 0.0
    %667 = vmatpush1.msra.mxu0 0.0
    %668 = vmatprep.subr.mxu0 0.0
    %669 = vmatpush1.msra.mxu0 0.0
    %670 = vmatprep.mubr.f32.mxu0 0.0
    %671 = vmatmul.mubr.f32.gmra.mrb[0].mxu0 %v604
    %v672 = vpop.f32.mrb[0].mxu0
    %v673 = vadd.f32 0.0, %v672
    %v674 = vpop.f32.mrb[0].mxu0
    %675 = vdwg.mxu0
    %v676 = vadd.f32 %v570, %v673
    %677 = vst.msk [vmem:[#allocation4] sm:$0x1] %vm568, %v676
    // Predicated region
    $region14: #{tpu_custom_call.1} parent=1 // pred_check
      _
    $region15: #{tpu_custom_call.1} parent=1 // pred_check_branch
      %679 = sbr.rel (0) target = $region17
    $region16: #{tpu_custom_call.1} parent=1 // pred_region
      %s681 = ssub.s32 16, 16
      %682 = vsyncadd [#allocation3], %s681
      %s684 = sshll.u32 [#allocation2], 4
      %s685 = int_to_ptr.vmem [resolvable:$true] %s684
      %687 = dma.vmem_to_hbm [thread:$0]  %s685, 16, %s2, [#allocation3]
    $region17: #{tpu_custom_call.1} parent=1 // pred_fallthru
      _
    // Predicated region
    $region18: #{tpu_custom_call.1} parent=1 // pred_check
      _
    $region19: #{tpu_custom_call.1} parent=1 // pred_check_branch
      %689 = sbr.rel (0) target = $region21
    $region20: #{tpu_custom_call.1} parent=1 // pred_region
      %s691 = ssub.s32 16, 16
      %692 = vsyncadd [#allocation5], %s691
      %s694 = sshll.u32 [#allocation4], 4
      %s695 = int_to_ptr.vmem [resolvable:$true] %s694
      %697 = dma.vmem_to_hbm [thread:$0]  %s695, 16, %s3, [#allocation5]
    $region21: #{tpu_custom_call.1} parent=1 // pred_fallthru
      _
    // Predicated region
    $region22: #{tpu_custom_call.1} parent=1 // pred_check
      _
    $region23: #{tpu_custom_call.1} parent=1 // pred_check_branch
      %699 = sbr.rel (0) target = $region25
    $region24: #{tpu_custom_call.1} parent=1 // pred_region
      %700 = dma.done [#allocation3], 16
    $region25: #{tpu_custom_call.1} parent=1 // pred_fallthru
      _
    // Predicated region
    $region26: #{tpu_custom_call.1} parent=1 // pred_check
      _
    $region27: #{tpu_custom_call.1} parent=1 // pred_check_branch
      %702 = sbr.rel (0) target = $region29
    $region28: #{tpu_custom_call.1} parent=1 // pred_region
      %703 = dma.done [#allocation5], 16
    $region29: #{tpu_custom_call.1} parent=1 // pred_fallthru
      _
    %704 = vsyncpa [#allocation3], 1
    %705 = vsyncpa [#allocation5], 1

</llo_original>
